<compile_context>
chip_gen: v5e
topology: v5e:2x2
jax: 0.10.0
libtpu: 0.0.40
codegen_flags: <defaults>
</compile_context>

<pallas_src>
import functools
import math

import jax
import jax.numpy as jnp
from jax.experimental import pallas as pl
from jax.experimental.pallas import tpu as pltpu

LANE = 128     # f32/bf16 lane width -> interior (hidden) feature dims pad to this
SUBLANE = 8    # f32 sublane width   -> batch pads to this


def _round_up(n, m):
    return ((n + m - 1) // m) * m


def _pad2d(a, rows, cols):
    r, c = a.shape
    if r == rows and c == cols:
        return a
    return jnp.pad(a, ((0, rows - r), (0, cols - c)))


# ----------------------------- Pallas kernel --------------------------------

def _fused_mlp_kernel(*refs, n_layers):
    """Entire SpinalNeuralNetwork forward (mean head) in one kernel.

    refs = (x_ref, w0, b0, w1, b1, ..., w_{L-1}, b_{L-1}, out_ref)
      hidden layers: tanh(h @ W + b)   (SpinalNetworkModule 'continuous_reinforcement')
      final layer:   h @ W + b         (mean of 'continuous_reinforcement_final')

    Matmul operands are bf16 (weights pre-cast at prep time, activations cast
    in-register) with preferred_element_type=f32 -> native MXU throughput with
    f32 accumulation.  Bias add and tanh stay in f32 (exact epilogue; v5e EUP
    has no bf16 path).  Intermediate activations never leave VMEM/vregs.
    """
    x_ref = refs[0]
    out_ref = refs[-1]
    h = x_ref[...]                                   # f32 (tb, din0)
    for i in range(n_layers):
        w = refs[1 + 2 * i][...]                     # bf16 (Din_p, Dout_p)
        b = refs[2 + 2 * i][...]                     # f32  (1, Dout_p)
        acc = jnp.dot(h.astype(jnp.bfloat16), w,
                      preferred_element_type=jnp.float32) + b
        h = jnp.tanh(acc) if i < n_layers - 1 else acc
    out_ref[...] = h.astype(out_ref.dtype)


# --------------------------- parameter preparation ---------------------------

def prepare_params(params):
    """Pre-pad + pre-cast parameters ONCE (hoisted out of the forward path).

    * interior (hidden) feature dims pad to 128 lanes with exact zeros
      (zero weight cols/rows + zero bias => tanh(0)=0, so padding is exact);
    * layer-0 input dim and final output dim stay UNPADDED so x / mean move
      through HBM at their true widths (blocks use the full array dim);
    * weights cast to bf16 once; biases stay f32 for the f32 epilogue.
    Returns (flat_params, pdims) where pdims are the per-stage widths seen by
    the kernel.
    """
    n_layers = len(params)
    dims = [params[0][0].shape[0]] + [w.shape[1] for (w, _) in params]
    pdims = list(dims)
    for i in range(1, n_layers):                 # hidden widths only
        pdims[i] = _round_up(dims[i], LANE)
    flat = []
    for i, (w, b) in enumerate(params):
        flat.append(_pad2d(w, pdims[i], pdims[i + 1]).astype(jnp.bfloat16))
        flat.append(_pad2d(b, 1, pdims[i + 1]).astype(jnp.float32))
    return tuple(flat), pdims


# ------------------------------- wrapper -------------------------------------

def spinal_forward(x, flat_params, pdims, log_std_lin, *,
                   log_std_min=-20.0, log_std_max=2.0, batch_tile=1024):
    """SpinalNeuralNetwork.forward (plasticity=None) -> (mean, clamped log_std)."""
    assert batch_tile % SUBLANE == 0
    B, din0 = x.shape
    assert din0 == pdims[0], "x feature dim must match prepared params"
    n_layers = len(flat_params) // 2
    ac_space = pdims[-1]

    kern = functools.partial(_fused_mlp_kernel, n_layers=n_layers)
    B8 = _round_up(B, SUBLANE)
    use_grid = B8 > batch_tile

    if not use_grid:
        # Single shot: no grid, everything VMEM-resident, zero grid bookkeeping.
        xp = _pad2d(x, B8, din0)
        vmem = pl.BlockSpec(memory_space=pltpu.MemorySpace.VMEM)
        mean_p = pl.pallas_call(
            kern,
            out_shape=jax.ShapeDtypeStruct((B8, ac_space), x.dtype),
            in_specs=[vmem] * (1 + len(flat_params)),
            out_specs=vmem,
        )(xp, *flat_params)
    else:
        # Batch-tiled grid.  Even tile count >= 2 so the "parallel" axis shards
        # evenly across v7x's two TensorCores; tb is re-derived from it (<= the
        # requested batch_tile) to minimize padded-row waste while staying far
        # above the ~0.35us/step overhead regime.
        n_tiles = max(2, 2 * pl.cdiv(pl.cdiv(B8, batch_tile), 2))
        tb = _round_up(pl.cdiv(B8, n_tiles), SUBLANE)
        Bp = n_tiles * tb
        xp = _pad2d(x, Bp, din0)

        # x moves through HBM at its true width (block last dim == full dim);
        # the output is emitted at its true (tb, ac_space) width -> no padded
        # lanes ever hit HBM.  Weights/biases use a constant index_map so they
        # are DMA'd once and stay VMEM-resident; they total well under 1 MiB
        # here, so the default double-buffering is left alone (pl.Buffered(1)
        # only matters if latent widths grow far past 128).
        in_specs = [pl.BlockSpec((tb, din0), lambda i: (i, 0))]
        for li in range(n_layers):
            in_specs.append(
                pl.BlockSpec((pdims[li], pdims[li + 1]), lambda i: (0, 0)))
            in_specs.append(
                pl.BlockSpec((1, pdims[li + 1]), lambda i: (0, 0)))
        mean_p = pl.pallas_call(
            kern,
            out_shape=jax.ShapeDtypeStruct((Bp, ac_space), x.dtype),
            grid=(n_tiles,),
            in_specs=in_specs,
            out_specs=pl.BlockSpec((tb, ac_space), lambda i: (i, 0)),
            compiler_params=pltpu.CompilerParams(
                dimension_semantics=("parallel",)),
        )(xp, *flat_params)

    mean = mean_p[:B] if mean_p.shape[0] != B else mean_p
    # log_std does not depend on x: clamp the tiny (1, act) parameter, then
    # broadcast lazily -- hoisted out of the Pallas kernel entirely.
    log_std = jnp.broadcast_to(
        jnp.clip(log_std_lin, log_std_min, log_std_max), mean.shape)
    return mean, log_std


# --------------------------- parameter set-up --------------------------------

def init_spinal_params(key, ob_space, latent_shape, ac_space):
    """Mirrors SpinalNeuralNetwork.__init__ for network_type='cont_pg_rl':
       network_shape = [ob_space] + latent_shape + [ac_space];
       hidden layers: xavier_normal_ weights, zero bias;
       final layer:   xavier_normal_ weights, zero bias, log_std_lin = -0.5."""
    network_shape = [ob_space] + list(latent_shape) + [ac_space]
    n_layers = len(network_shape) - 1
    keys = jax.random.split(key, n_layers)
    params = []
    for i in range(n_layers):
        din, dout = network_shape[i], network_shape[i + 1]
        std = math.sqrt(2.0 / (din + dout))           # xavier_normal_, gain=1
        w = jax.random.normal(keys[i], (din, dout), jnp.float32) * std
        b = jnp.zeros((1, dout), jnp.float32)         # bias.data *= 0
        params.append((w, b))
    log_std_lin = jnp.ones((1, ac_space), jnp.float32) * -0.5
    return params, log_std_lin


# ------------------------------- references -----------------------------------

def spinal_forward_ref(x, params, log_std_lin, bf16_matmul=False):
    """Pure-JAX reference.  bf16_matmul=True mimics the kernel's bf16-operand /
    f32-accumulation matmuls (for tight tolerance checks)."""
    def mm(a, w):
        if bf16_matmul:
            return jnp.dot(a.astype(jnp.bfloat16), w.astype(jnp.bfloat16),
                           preferred_element_type=jnp.float32)
        return a @ w
    h = x
    for (w, b) in params[:-1]:
        h = jnp.tanh(mm(h, w) + b)
    w, b = params[-1]
    mean = mm(h, w) + b
    log_std = jnp.clip(jnp.broadcast_to(log_std_lin, mean.shape), -20.0, 2.0)
    return mean, log_std


# --------------------------------- main ---------------------------------------

if __name__ == "__main__":
    key = jax.random.PRNGKey(0)
    kx, kx2, kp = jax.random.split(key, 3)

    batch = 2
    obs_space = 16
    latent_shape = [32, 32]
    act_space = 8

    params, log_std_lin = init_spinal_params(kp, obs_space, latent_shape, act_space)
    flat_params, pdims = prepare_params(params)        # hoisted: done once

    # --- small batch: fused single-shot (no grid) path ---
    x = jax.random.normal(kx, (batch, obs_space), jnp.float32)
    mean, log_std = spinal_forward(x, flat_params, pdims, log_std_lin)
    mean = jax.block_until_ready(mean)
    log_std = jax.block_until_ready(log_std)

    mean_bf16, log_std_ref = spinal_forward_ref(x, params, log_std_lin, bf16_matmul=True)
    mean_f32, _ = spinal_forward_ref(x, params, log_std_lin, bf16_matmul=False)
    assert mean.shape == (batch, act_space)
    assert log_std.shape == (batch, act_space)
    assert jnp.allclose(mean, mean_bf16, atol=1e-3, rtol=1e-3)   # tight vs bf16-matmul ref
    assert jnp.allclose(mean, mean_f32, atol=1e-1, rtol=0.0)     # loose sanity vs f32 ref
    assert jnp.allclose(log_std, log_std_ref, atol=1e-6, rtol=1e-6)

    # --- large batch: batch-tiled parallel-grid path (even #tiles, tb<=1024) ---
    big_batch = 2500
    xb = jax.random.normal(kx2, (big_batch, obs_space), jnp.float32)
    mean_b, log_std_b = spinal_forward(xb, flat_params, pdims, log_std_lin)
    mean_b = jax.block_until_ready(mean_b)
    log_std_b = jax.block_until_ready(log_std_b)

    mean_b_bf16, log_std_b_ref = spinal_forward_ref(xb, params, log_std_lin, bf16_matmul=True)
    mean_b_f32, _ = spinal_forward_ref(xb, params, log_std_lin, bf16_matmul=False)
    assert mean_b.shape == (big_batch, act_space)
    assert jnp.allclose(mean_b, mean_b_bf16, atol=1e-3, rtol=1e-3)
    assert jnp.allclose(mean_b, mean_b_f32, atol=1e-1, rtol=0.0)
    assert jnp.allclose(log_std_b, log_std_b_ref, atol=1e-6, rtol=1e-6)

    # TODO(synk): plasticity='neuromodulated' branch (stateful Hebbian trace
    # update with torch.mm / clamp side effects) is not part of the default
    # config and is not implemented here.

    print("KERNEL_OK")
</pallas_src>

<mosaic_0001>
module attributes {stable_mosaic.version = 11 : i64} {
  func.func @_fused_mlp_kernel(%arg0: memref<8x16xf32, #tpu.memory_space<vmem>>, %arg1: memref<16x128xbf16, #tpu.memory_space<vmem>>, %arg2: memref<1x128xf32, #tpu.memory_space<vmem>>, %arg3: memref<128x128xbf16, #tpu.memory_space<vmem>>, %arg4: memref<1x128xf32, #tpu.memory_space<vmem>>, %arg5: memref<128x8xbf16, #tpu.memory_space<vmem>>, %arg6: memref<1x8xf32, #tpu.memory_space<vmem>>, %arg7: memref<8x8xf32, #tpu.memory_space<vmem>>) attributes {dimension_semantics = [], scalar_prefetch = 0 : i64, scratch_operands = 0 : i64, tpu.core_type = #tpu.core_type<tc>} {
    %c0 = arith.constant 0 : index
    %c0_0 = arith.constant 0 : index
    %0 = vector.load %arg0[%c0, %c0_0] : memref<8x16xf32, #tpu.memory_space<vmem>>, vector<8x16xf32>
    %c0_1 = arith.constant 0 : index
    %c0_2 = arith.constant 0 : index
    %1 = vector.load %arg1[%c0_1, %c0_2] : memref<16x128xbf16, #tpu.memory_space<vmem>>, vector<16x128xbf16>
    %c0_3 = arith.constant 0 : index
    %c0_4 = arith.constant 0 : index
    %2 = vector.load %arg2[%c0_3, %c0_4] : memref<1x128xf32, #tpu.memory_space<vmem>>, vector<1x128xf32>
    %3 = arith.truncf %0 : vector<8x16xf32> to vector<8x16xbf16>
    %cst = arith.constant dense<0.000000e+00> : vector<8x128xf32>
    %4 = tpu.matmul %3, %1, %cst {dimension_numbers = #tpu.dot_dimension_numbers<[1], [0], [0], [1], [0, 0, 1, 1], [], []>} : vector<8x16xbf16>, vector<16x128xbf16>, vector<8x128xf32> -> vector<8x128xf32>
    %5 = vector.broadcast %2 : vector<1x128xf32> to vector<8x128xf32>
    %6 = arith.addf %4, %5 : vector<8x128xf32>
    %7 = math.tanh %6 : vector<8x128xf32>
    %c0_5 = arith.constant 0 : index
    %c0_6 = arith.constant 0 : index
    %8 = vector.load %arg3[%c0_5, %c0_6] : memref<128x128xbf16, #tpu.memory_space<vmem>>, vector<128x128xbf16>
    %c0_7 = arith.constant 0 : index
    %c0_8 = arith.constant 0 : index
    %9 = vector.load %arg4[%c0_7, %c0_8] : memref<1x128xf32, #tpu.memory_space<vmem>>, vector<1x128xf32>
    %10 = arith.truncf %7 : vector<8x128xf32> to vector<8x128xbf16>
    %cst_9 = arith.constant dense<0.000000e+00> : vector<8x128xf32>
    %11 = tpu.matmul %10, %8, %cst_9 {dimension_numbers = #tpu.dot_dimension_numbers<[1], [0], [0], [1], [0, 0, 1, 1], [], []>} : vector<8x128xbf16>, vector<128x128xbf16>, vector<8x128xf32> -> vector<8x128xf32>
    %12 = vector.broadcast %9 : vector<1x128xf32> to vector<8x128xf32>
    %13 = arith.addf %11, %12 : vector<8x128xf32>
    %14 = math.tanh %13 : vector<8x128xf32>
    %c0_10 = arith.constant 0 : index
    %c0_11 = arith.constant 0 : index
    %15 = vector.load %arg5[%c0_10, %c0_11] : memref<128x8xbf16, #tpu.memory_space<vmem>>, vector<128x8xbf16>
    %c0_12 = arith.constant 0 : index
    %c0_13 = arith.constant 0 : index
    %16 = vector.load %arg6[%c0_12, %c0_13] : memref<1x8xf32, #tpu.memory_space<vmem>>, vector<1x8xf32>
    %17 = arith.truncf %14 : vector<8x128xf32> to vector<8x128xbf16>
    %cst_14 = arith.constant dense<0.000000e+00> : vector<8x8xf32>
    %18 = tpu.matmul %17, %15, %cst_14 {dimension_numbers = #tpu.dot_dimension_numbers<[1], [0], [0], [1], [0, 0, 1, 1], [], []>} : vector<8x128xbf16>, vector<128x8xbf16>, vector<8x8xf32> -> vector<8x8xf32>
    %19 = vector.broadcast %16 : vector<1x8xf32> to vector<8x8xf32>
    %20 = arith.addf %18, %19 : vector<8x8xf32>
    %c0_15 = arith.constant 0 : index
    %c0_16 = arith.constant 0 : index
    %21 = vector.load %arg7[%c0_15, %c0_16] : memref<8x8xf32, #tpu.memory_space<vmem>>, vector<8x8xf32>
    tpu.vector_store %arg7[%c0_15, %c0_16], %20 {strides = array<i32>} : memref<8x8xf32, #tpu.memory_space<vmem>>, vector<8x8xf32>,
    return
  }
}

</mosaic_0001>

<llo_original>
// kernel: tpu_custom_call.1
$region0: #{tpu_custom_call.1}
  #allocation0 [shape = 'u32[]', space=smem, size = 0x4, offset = 0x4, fixed_abs, tag = 'smem constant byte address 0x4 - core index']
  #allocation1 [shape = 'u32[72,128]{1,0:T(1,128)}', space=vmem, size = 0x9000, scoped, tag = 'internal scratch']
  %s0 = inlined_call_operand.hbm [shape: f32[8,16], index: 0, kind: input, shape index: {}]
  %s1 = inlined_call_operand.hbm [shape: bf16[16,128], index: 1, kind: input, shape index: {}]
  %s2 = inlined_call_operand.vmem [shape: f32[1,128], index: 2, kind: input, shape index: {}]
  %s3 = inlined_call_operand.vmem [shape: bf16[128,128], index: 3, kind: input, shape index: {}]
  %s4 = inlined_call_operand.vmem [shape: f32[1,128], index: 4, kind: input, shape index: {}]
  %s5 = inlined_call_operand.vmem [shape: bf16[128,8], index: 5, kind: input, shape index: {}]
  %s6 = inlined_call_operand.vmem [shape: f32[1,8], index: 6, kind: input, shape index: {}]
  %s7 = inlined_call_operand.hbm [shape: f32[8,8], index: 7, kind: output, shape index: {}]
  %s8 = sld [smem:[#allocation0]]
  $region46: #{tpu_custom_call.1} parent=0
    _
  %s10 = ssub.s32 1, %s8
  %s11 = scalar_select 0, %s10, %s8
  $region1: #{tpu_custom_call.1} parent=0
    #allocation2 [shape = 'u8[4096]{0}', space=vmem, size = 0x1000, scoped, tag = 'input window, operand 0, single buffered']
    #allocation3 [shape = 's32[1]{0}', space=sflag, size = 0x4, scoped, tag = 'scoped memory for tpu_custom_call.1']
    #allocation4 [shape = 's32[1]{0}', space=sflag, size = 0x4, scoped, tag = 'scoped memory for tpu_custom_call.1']
    #allocation5 [shape = 'u8[4096]{0}', space=vmem, size = 0x1000, scoped, tag = 'input window, operand 1, single buffered']
    #allocation6 [shape = 's32[1]{0}', space=sflag, size = 0x4, scoped, tag = 'scoped memory for tpu_custom_call.1']
    #allocation7 [shape = 'u8[4096]{0}', space=vmem, size = 0x1000, scoped, tag = 'output window, operand 0, single buffered']
    %12 = vsyncpa [#allocation3], 0
    %13 = vsyncpa [#allocation6], 0
    %14 = vsyncpa [#allocation4], 0
    // Predicated region
    $region2: #{tpu_custom_call.1} parent=1 // pred_check
      _
    $region3: #{tpu_custom_call.1} parent=1 // pred_check_branch
      %16 = sbr.rel (0) target = $region5
    $region4: #{tpu_custom_call.1} parent=1 // pred_region
      %18 = vsyncadd [#allocation3], 0
      %s20 = sshll.u32 %s0, 4
      %s21 = int_to_ptr.hbm [resolvable:$true] %s20
      %s22 = sshll.u32 [#allocation2], 4
      %s23 = int_to_ptr.vmem [resolvable:$true] %s22
      %25 = dma.hbm_to_vmem [thread:$0]  %s21, 128, %s23, [#allocation3]
    $region5: #{tpu_custom_call.1} parent=1 // pred_fallthru
      _
    // Predicated region
    $region6: #{tpu_custom_call.1} parent=1 // pred_check
      _
    $region7: #{tpu_custom_call.1} parent=1 // pred_check_branch
      %27 = sbr.rel (0) target = $region9
    $region8: #{tpu_custom_call.1} parent=1 // pred_region
      %29 = vsyncadd [#allocation6], 0
      %s30 = sshll.u32 %s1, 4
      %s31 = int_to_ptr.hbm [resolvable:$true] %s30
      %s32 = sshll.u32 [#allocation5], 4
      %s33 = int_to_ptr.vmem [resolvable:$true] %s32
      %38 = dma.hbm_to_vmem [thread:$0]  %s31, 128, %s33, [#allocation6], 64, 64, 4
    $region9: #{tpu_custom_call.1} parent=1 // pred_fallthru
      _
    // Predicated region
    $region10: #{tpu_custom_call.1} parent=1 // pred_check
      _
    $region11: #{tpu_custom_call.1} parent=1 // pred_check_branch
      %40 = sbr.rel (0) target = $region13
    $region12: #{tpu_custom_call.1} parent=1 // pred_region
      _
    $region13: #{tpu_custom_call.1} parent=1 // pred_fallthru
      _
    // Predicated region
    $region14: #{tpu_custom_call.1} parent=1 // pred_check
      _
    $region15: #{tpu_custom_call.1} parent=1 // pred_check_branch
      %42 = sbr.rel (0) target = $region17
    $region16: #{tpu_custom_call.1} parent=1 // pred_region
      _
    $region17: #{tpu_custom_call.1} parent=1 // pred_fallthru
      _
    // Predicated region
    $region18: #{tpu_custom_call.1} parent=1 // pred_check
      _
    $region19: #{tpu_custom_call.1} parent=1 // pred_check_branch
      %44 = sbr.rel (0) target = $region21
    $region20: #{tpu_custom_call.1} parent=1 // pred_region
      _
    $region21: #{tpu_custom_call.1} parent=1 // pred_fallthru
      _
    // Predicated region
    $region22: #{tpu_custom_call.1} parent=1 // pred_check
      _
    $region23: #{tpu_custom_call.1} parent=1 // pred_check_branch
      %46 = sbr.rel (0) target = $region25
    $region24: #{tpu_custom_call.1} parent=1 // pred_region
      _
    $region25: #{tpu_custom_call.1} parent=1 // pred_fallthru
      _
    // Predicated region
    $region26: #{tpu_custom_call.1} parent=1 // pred_check
      _
    $region27: #{tpu_custom_call.1} parent=1 // pred_check_branch
      %48 = sbr.rel (0) target = $region29
    $region28: #{tpu_custom_call.1} parent=1 // pred_region
      _
    $region29: #{tpu_custom_call.1} parent=1 // pred_fallthru
      _
    // Predicated region
    $region30: #{tpu_custom_call.1} parent=1 // pred_check
      _
    $region31: #{tpu_custom_call.1} parent=1 // pred_check_branch
      %50 = sbr.rel (0) target = $region33
    $region32: #{tpu_custom_call.1} parent=1 // pred_region
      %52 = dma.done [#allocation3], 128
    $region33: #{tpu_custom_call.1} parent=1 // pred_fallthru
      _
    // Predicated region
    $region34: #{tpu_custom_call.1} parent=1 // pred_check
      _
    $region35: #{tpu_custom_call.1} parent=1 // pred_check_branch
      %54 = sbr.rel (0) target = $region37
    $region36: #{tpu_custom_call.1} parent=1 // pred_region
      %56 = dma.done [#allocation6], 128
    $region37: #{tpu_custom_call.1} parent=1 // pred_fallthru
      _
    %v58 = vld [vmem:[#allocation2] sm:$0xff]
    %v59 = vld [vmem:[#allocation5] sm:$0xf]
    %v60 = vld [vmem:[#allocation5 + $0x4] sm:$0xf]
    %v61 = vld [vmem:[%s2] sm:$0x1]
    %v62 = vpack.c.bf16 %v58, %v58
    %v64 = vperm.slane %v61, 0
    %v68 = vunpack.c.l.b16 %v59
    %v69 = vunpack.c.l.b16 %v60
    %v70 = vpack.c.b16 %v69, %v68
    %vm72 = vcmask 130048
    %v74 = vsel %vm72, %v62, 0
    %76 = vmatpush.bf16.msra.mxu0 0
    %77 = vmatpush.bf16.msra.mxu0 0
    %78 = vmatpush.bf16.msra.mxu0 0
    %79 = vmatpush.bf16.msra.mxu0 0
    %80 = vmatpush.bf16.msra.mxu0 0
    %81 = vmatpush.bf16.msra.mxu0 0
    %82 = vmatpush.bf16.msra.mxu0 0
    %83 = vmatpush.bf16.msra.mxu0 %v70
    %84 = vmatmul.bf16.gmra.mxu0 %v74
    %v85 = vpop.f32.mrf.mxu0
    %v86 = vadd.f32 %v64, %v85
    %v87 = vpop.f32.mrf.mxu0
    %88 = vdwg.mxu0
    %v89 = vtanh.pop %v86
    %v90 = vld [vmem:[%s3] sm:$0xf]
    %v91 = vld [vmem:[%s3 + $0x4] sm:$0xf]
    %v92 = vld [vmem:[%s3 + $0x8] sm:$0xf]
    %v93 = vld [vmem:[%s3 + $0xc] sm:$0xf]
    %v94 = vld [vmem:[%s3 + $0x10] sm:$0xf]
    %v95 = vld [vmem:[%s3 + $0x14] sm:$0xf]
    %v96 = vld [vmem:[%s3 + $0x18] sm:$0xf]
    %v97 = vld [vmem:[%s3 + $0x1c] sm:$0xf]
    %v98 = vld [vmem:[%s3 + $0x20] sm:$0xf]
    %v99 = vld [vmem:[%s3 + $0x24] sm:$0xf]
    %v100 = vld [vmem:[%s3 + $0x28] sm:$0xf]
    %v101 = vld [vmem:[%s3 + $0x2c] sm:$0xf]
    %v102 = vld [vmem:[%s3 + $0x30] sm:$0xf]
    %v103 = vld [vmem:[%s3 + $0x34] sm:$0xf]
    %v104 = vld [vmem:[%s3 + $0x38] sm:$0xf]
    %v105 = vld [vmem:[%s3 + $0x3c] sm:$0xf]
    %v106 = vld [vmem:[%s4] sm:$0x1]
    %v107 = vpack.c.bf16 %v89, %v89
    %v109 = vperm.slane %v106, 0
    %v127 = vunpack.c.l.b16 %v90
    %v128 = vunpack.c.l.b16 %v91
    %v129 = vunpack.c.l.b16 %v92
    %v130 = vunpack.c.l.b16 %v93
    %v131 = vunpack.c.l.b16 %v94
    %v132 = vunpack.c.l.b16 %v95
    %v133 = vunpack.c.l.b16 %v96
    %v134 = vunpack.c.l.b16 %v97
    %v135 = vunpack.c.l.b16 %v98
    %v136 = vunpack.c.l.b16 %v99
    %v137 = vunpack.c.l.b16 %v100
    %v138 = vunpack.c.l.b16 %v101
    %v139 = vunpack.c.l.b16 %v102
    %v140 = vunpack.c.l.b16 %v103
    %v141 = vunpack.c.l.b16 %v104
    %v142 = vunpack.c.l.b16 %v105
    %v143 = vpack.c.b16 %v128, %v127
    %v144 = vpack.c.b16 %v130, %v129
    %v145 = vpack.c.b16 %v132, %v131
    %v146 = vpack.c.b16 %v134, %v133
    %v147 = vpack.c.b16 %v136, %v135
    %v148 = vpack.c.b16 %v138, %v137
    %v149 = vpack.c.b16 %v140, %v139
    %v150 = vpack.c.b16 %v142, %v141
    %159 = vmatpush.bf16.msra.mxu0 %v150
    %160 = vmatpush.bf16.msra.mxu0 %v149
    %161 = vmatpush.bf16.msra.mxu0 %v148
    %162 = vmatpush.bf16.msra.mxu0 %v147
    %163 = vmatpush.bf16.msra.mxu0 %v146
    %164 = vmatpush.bf16.msra.mxu0 %v145
    %165 = vmatpush.bf16.msra.mxu0 %v144
    %166 = vmatpush.bf16.msra.mxu0 %v143
    %167 = vmatmul.bf16.gmra.mxu0 %v107
    %v168 = vpop.f32.mrf.mxu0
    %v169 = vadd.f32 %v109, %v168
    %v170 = vpop.f32.mrf.mxu0
    %171 = vdwg.mxu0
    %v172 = vtanh.pop %v169
    %v173 = vld [vmem:[%s5] sm:$0xf]
    %v174 = vld [vmem:[%s5 + $0x4] sm:$0xf]
    %v175 = vld [vmem:[%s5 + $0x8] sm:$0xf]
    %v176 = vld [vmem:[%s5 + $0xc] sm:$0xf]
    %v177 = vld [vmem:[%s5 + $0x10] sm:$0xf]
    %v178 = vld [vmem:[%s5 + $0x14] sm:$0xf]
    %v179 = vld [vmem:[%s5 + $0x18] sm:$0xf]
    %v180 = vld [vmem:[%s5 + $0x1c] sm:$0xf]
    %v181 = vld [vmem:[%s5 + $0x20] sm:$0xf]
    %v182 = vld [vmem:[%s5 + $0x24] sm:$0xf]
    %v183 = vld [vmem:[%s5 + $0x28] sm:$0xf]
    %v184 = vld [vmem:[%s5 + $0x2c] sm:$0xf]
    %v185 = vld [vmem:[%s5 + $0x30] sm:$0xf]
    %v186 = vld [vmem:[%s5 + $0x34] sm:$0xf]
    %v187 = vld [vmem:[%s5 + $0x38] sm:$0xf]
    %v188 = vld [vmem:[%s5 + $0x3c] sm:$0xf]
    %v189 = vld [vmem:[%s6] sm:$0x1]
    %v190 = vpack.c.bf16 %v172, %v172
    %v192 = vperm.slane %v189, 0
    %v210 = vunpack.c.l.b16 %v173
    %v211 = vunpack.c.l.b16 %v174
    %v212 = vunpack.c.l.b16 %v175
    %v213 = vunpack.c.l.b16 %v176
    %v214 = vunpack.c.l.b16 %v177
    %v215 = vunpack.c.l.b16 %v178
    %v216 = vunpack.c.l.b16 %v179
    %v217 = vunpack.c.l.b16 %v180
    %v218 = vunpack.c.l.b16 %v181
    %v219 = vunpack.c.l.b16 %v182
    %v220 = vunpack.c.l.b16 %v183
    %v221 = vunpack.c.l.b16 %v184
    %v222 = vunpack.c.l.b16 %v185
    %v223 = vunpack.c.l.b16 %v186
    %v224 = vunpack.c.l.b16 %v187
    %v225 = vunpack.c.l.b16 %v188
    %v226 = vpack.c.b16 %v211, %v210
    %v227 = vpack.c.b16 %v213, %v212
    %v228 = vpack.c.b16 %v215, %v214
    %v229 = vpack.c.b16 %v217, %v216
    %v230 = vpack.c.b16 %v219, %v218
    %v231 = vpack.c.b16 %v221, %v220
    %v232 = vpack.c.b16 %v223, %v222
    %v233 = vpack.c.b16 %v225, %v224
    %242 = vmatpush.bf16.msra.mxu0 %v233
    %243 = vmatpush.bf16.msra.mxu0 %v232
    %244 = vmatpush.bf16.msra.mxu0 %v231
    %245 = vmatpush.bf16.msra.mxu0 %v230
    %246 = vmatpush.bf16.msra.mxu0 %v229
    %247 = vmatpush.bf16.msra.mxu0 %v228
    %248 = vmatpush.bf16.msra.mxu0 %v227
    %249 = vmatpush.bf16.msra.mxu0 %v226
    %250 = vmatmul.bf16.gmra.mxu0 %v190
    %v251 = vpop.f32.mrf.mxu0
    %v252 = vadd.f32 %v192, %v251
    %v253 = vpop.f32.mrf.mxu0
    %254 = vdwg.mxu0
    %vm255 = vcmask 64512
    %256 = vst.msk [vmem:[#allocation7] sm:$0xff] %vm255, %v252
    // Predicated region
    $region38: #{tpu_custom_call.1} parent=1 // pred_check
      _
    $region39: #{tpu_custom_call.1} parent=1 // pred_check_branch
      %258 = sbr.rel (0) target = $region41
    $region40: #{tpu_custom_call.1} parent=1 // pred_region
      %260 = vsyncadd [#allocation4], 0
      %s262 = sshll.u32 [#allocation7], 4
      %s263 = int_to_ptr.vmem [resolvable:$true] %s262
      %s264 = sshll.u32 %s7, 4
      %s265 = int_to_ptr.hbm [resolvable:$true] %s264
      %267 = dma.vmem_to_hbm [thread:$0]  %s263, 128, %s265, [#allocation4]
    $region41: #{tpu_custom_call.1} parent=1 // pred_fallthru
      _
    // Predicated region
    $region42: #{tpu_custom_call.1} parent=1 // pred_check
      _
    $region43: #{tpu_custom_call.1} parent=1 // pred_check_branch
      %269 = sbr.rel (0) target = $region45
    $region44: #{tpu_custom_call.1} parent=1 // pred_region
      %271 = dma.done [#allocation4], 128
    $region45: #{tpu_custom_call.1} parent=1 // pred_fallthru
      _
    %272 = vsyncpa [#allocation3], 1
    %273 = vsyncpa [#allocation6], 1
    %274 = vsyncpa [#allocation4], 1

</llo_original>
